<compile_context>
chip_gen: v7x
topology: tpu7x:2x2x1
jax: 0.10.0
libtpu: 0.0.40
codegen_flags: <defaults>
</compile_context>

<pallas_src>
import math

import jax
import jax.numpy as jnp
from jax.experimental import pallas as pl
from jax.experimental.pallas import tpu as pltpu


# ---------------------------------------------------------------------------
# Kernel
# ---------------------------------------------------------------------------
def ctrcvr_kernel(x_ref, emb_ref,
                  w1_ref, b1_ref, w2_ref, b2_ref,
                  wh_ref, we_ref, bh_ref,
                  out_ref):
    # fc1 + relu  (f32 MXU accumulation; cast back to operand dtype for next MXU op)
    h1 = jnp.dot(x_ref[...], w1_ref[...], preferred_element_type=jnp.float32)
    h1 = jnp.maximum(h1 + b1_ref[...], 0.0).astype(w2_ref.dtype)

    # fc2 + relu
    h2 = jnp.dot(h1, w2_ref[...], preferred_element_type=jnp.float32)
    h2 = jnp.maximum(h2 + b2_ref[...], 0.0).astype(wh_ref.dtype)

    # Fused ctr/cvr head:
    #   concat([h2, ue, ie]) @ [wc | wv]  ==  h2 @ W_h + [ue||ie] @ W_e
    logits = (jnp.dot(h2, wh_ref[...], preferred_element_type=jnp.float32)
              + jnp.dot(emb_ref[...], we_ref[...], preferred_element_type=jnp.float32)
              + bh_ref[...])

    out_ref[...] = jax.nn.sigmoid(logits)   # (TB, 2): col 0 = ctr, col 1 = cvr


# ---------------------------------------------------------------------------
# Wrapper / glue
# ---------------------------------------------------------------------------
def ctrcvr_forward(x, user_id, item_id, params, *,
                   compute_dtype=jnp.float32, tile_b=512):
    """CTR/CVR forward. Embedding gather + head fusion are JAX glue; the
    matmul / relu / sigmoid hot path runs in a batch-tiled Pallas kernel."""
    B, input_dim = x.shape
    E = params["user_table"].shape[1]
    H1 = params["w1"].shape[1]          # 64
    H2 = params["w2"].shape[1]          # 32

    # --- Embedding lookups (glue), pre-concatenated into one (B, 2E) array.
    emb = jnp.concatenate([params["user_table"][user_id],
                           params["item_table"][item_id]], axis=-1)

    # --- Fuse the two heads column-wise and split row-wise (h-part / emb-part).
    w_head = jnp.concatenate([params["wc"], params["wv"]], axis=1)   # (H2+2E, 2)
    wh = w_head[:H2]                                                 # (H2, 2)
    we = w_head[H2:]                                                 # (2E, 2)
    b_head = jnp.concatenate([params["bc"], params["bv"]], axis=1)   # (1, 2)

    # --- Cast MXU operands (bf16 on v6e/v7x if requested); biases stay f32.
    cd = compute_dtype
    x_c = x.astype(cd)
    emb_c = emb.astype(cd)
    w1 = params["w1"].astype(cd)
    w2 = params["w2"].astype(cd)
    wh = wh.astype(cd)
    we = we.astype(cd)
    b1 = params["b1"].astype(jnp.float32)
    b2 = params["b2"].astype(jnp.float32)
    b_head = b_head.astype(jnp.float32)

    # --- Batch tiling (pad ragged tail with zero rows, sliced off afterwards).
    TB = tile_b if B >= tile_b else ((B + 7) // 8) * 8
    n_tiles = pl.cdiv(B, TB)
    B_pad = n_tiles * TB
    if B_pad != B:
        pad = B_pad - B
        x_c = jnp.pad(x_c, ((0, pad), (0, 0)))
        emb_c = jnp.pad(emb_c, ((0, pad), (0, 0)))

    def batch_spec(feat):
        return pl.BlockSpec((TB, feat), lambda i: (i, 0))

    def const_spec(arr):
        return pl.BlockSpec(arr.shape, lambda i: (0, 0))

    in_specs = [
        batch_spec(input_dim),        # x
        batch_spec(2 * E),            # emb
        const_spec(w1), const_spec(b1),
        const_spec(w2), const_spec(b2),
        const_spec(wh), const_spec(we), const_spec(b_head),
    ]
    out_specs = pl.BlockSpec((TB, 2), lambda i: (i, 0))
    out_shape = jax.ShapeDtypeStruct((B_pad, 2), jnp.float32)

    itemsize = jnp.dtype(cd).itemsize
    weight_bytes = sum(int(a.size) * jnp.dtype(a.dtype).itemsize
                       for a in (w1, b1, w2, b2, wh, we, b_head))
    cost = pl.CostEstimate(
        flops=2 * B_pad * (input_dim * H1 + H1 * H2 + (H2 + 2 * E) * 2),
        transcendentals=2 * B_pad,
        bytes_accessed=int((x_c.size + emb_c.size) * itemsize
                           + B_pad * 2 * 4 + weight_bytes),
    )

    compiler_params = pltpu.CompilerParams(
        dimension_semantics=("parallel",),
        vmem_limit_bytes=32 * 1024 * 1024,
    )

    out = pl.pallas_call(
        ctrcvr_kernel,
        out_shape=out_shape,
        grid=(n_tiles,),
        in_specs=in_specs,
        out_specs=out_specs,
        compiler_params=compiler_params,
        cost_estimate=cost,
    )(x_c, emb_c, w1, b1, w2, b2, wh, we, b_head)

    out = out[:B]
    return out[:, 0:1], out[:, 1:2]


# ---------------------------------------------------------------------------
# Params + pure-JAX reference
# ---------------------------------------------------------------------------
def init_params(key, input_dim, user_id_dim, item_id_dim, embedding_dim=8):
    """Deterministic synthetic parameter init (uniform, PyTorch-like scale)."""
    ks = jax.random.split(key, 10)

    def lin(kw, kb, fan_in, fan_out):
        bound = 1.0 / math.sqrt(fan_in)
        w = jax.random.uniform(kw, (fan_in, fan_out), jnp.float32, -bound, bound)
        b = jax.random.uniform(kb, (1, fan_out), jnp.float32, -bound, bound)
        return w, b

    w1, b1 = lin(ks[0], ks[1], input_dim, 64)
    w2, b2 = lin(ks[2], ks[3], 64, 32)
    cat_dim = 32 + 2 * embedding_dim
    wc, bc = lin(ks[4], ks[5], cat_dim, 1)
    wv, bv = lin(ks[6], ks[7], cat_dim, 1)

    user_table = jax.random.normal(ks[8], (user_id_dim, embedding_dim), jnp.float32)
    item_table = jax.random.normal(ks[9], (item_id_dim, embedding_dim), jnp.float32)

    return dict(w1=w1, b1=b1, w2=w2, b2=b2,
                wc=wc, bc=bc, wv=wv, bv=bv,
                user_table=user_table, item_table=item_table)


def reference_forward(x, user_id, item_id, params):
    """Pure-JAX reference of the PyTorch module forward."""
    h = jnp.maximum(x @ params["w1"] + params["b1"], 0.0)
    h = jnp.maximum(h @ params["w2"] + params["b2"], 0.0)
    ue = params["user_table"][user_id]
    ie = params["item_table"][item_id]
    cat = jnp.concatenate([h, ue, ie], axis=-1)
    ctr = jax.nn.sigmoid(cat @ params["wc"] + params["bc"])
    cvr = jax.nn.sigmoid(cat @ params["wv"] + params["bv"])
    return ctr, cvr


# ---------------------------------------------------------------------------
# Demo / correctness checks
# ---------------------------------------------------------------------------
if __name__ == "__main__":
    input_dim = 32
    user_id_dim = 100
    item_id_dim = 200
    embedding_dim = 8

    key = jax.random.PRNGKey(0)
    k_par, k_x, k_u, k_i = jax.random.split(key, 4)
    params = init_params(k_par, input_dim, user_id_dim, item_id_dim, embedding_dim)

    # --- Test 1: small batch, f32, single tile.
    B = 8
    x = jax.random.normal(k_x, (B, input_dim), jnp.float32)
    user_id = jax.random.randint(k_u, (B,), 0, user_id_dim)
    item_id = jax.random.randint(k_i, (B,), 0, item_id_dim)

    ctr, cvr = ctrcvr_forward(x, user_id, item_id, params)
    jax.block_until_ready((ctr, cvr))
    ctr_ref, cvr_ref = reference_forward(x, user_id, item_id, params)
    assert ctr.shape == (B, 1) and cvr.shape == (B, 1)
    assert jnp.allclose(ctr, ctr_ref, atol=1e-5, rtol=1e-5)
    assert jnp.allclose(cvr, cvr_ref, atol=1e-5, rtol=1e-5)

    # --- Test 2: multi-tile grid with a ragged tail (B=20, TB=8 -> 3 tiles, 4 pad rows).
    B2 = 20
    k_x2, k_u2, k_i2 = jax.random.split(jax.random.PRNGKey(1), 3)
    x2 = jax.random.normal(k_x2, (B2, input_dim), jnp.float32)
    uid2 = jax.random.randint(k_u2, (B2,), 0, user_id_dim)
    iid2 = jax.random.randint(k_i2, (B2,), 0, item_id_dim)
    ctr2, cvr2 = ctrcvr_forward(x2, uid2, iid2, params, tile_b=8)
    jax.block_until_ready((ctr2, cvr2))
    ctr2_ref, cvr2_ref = reference_forward(x2, uid2, iid2, params)
    assert ctr2.shape == (B2, 1) and cvr2.shape == (B2, 1)
    assert jnp.allclose(ctr2, ctr2_ref, atol=1e-5, rtol=1e-5)
    assert jnp.allclose(cvr2, cvr2_ref, atol=1e-5, rtol=1e-5)

    # --- Test 3: bf16 MXU operands (v6e/v7x path), f32 accumulation/epilogue.
    ctr3, cvr3 = ctrcvr_forward(x, user_id, item_id, params,
                                compute_dtype=jnp.bfloat16)
    jax.block_until_ready((ctr3, cvr3))
    assert jnp.allclose(ctr3, ctr_ref, atol=0.1)
    assert jnp.allclose(cvr3, cvr_ref, atol=0.1)

    print("KERNEL_OK")
</pallas_src>

<mosaic_0001>
module attributes {stable_mosaic.version = 11 : i64} {
  func.func @ctrcvr_kernel(%arg0: i32, %arg1: memref<8x32xf32, #tpu.memory_space<vmem>>, %arg2: memref<8x16xf32, #tpu.memory_space<vmem>>, %arg3: memref<32x64xf32, #tpu.memory_space<vmem>>, %arg4: memref<1x64xf32, #tpu.memory_space<vmem>>, %arg5: memref<64x32xf32, #tpu.memory_space<vmem>>, %arg6: memref<1x32xf32, #tpu.memory_space<vmem>>, %arg7: memref<32x2xf32, #tpu.memory_space<vmem>>, %arg8: memref<16x2xf32, #tpu.memory_space<vmem>>, %arg9: memref<1x2xf32, #tpu.memory_space<vmem>>, %arg10: memref<8x2xf32, #tpu.memory_space<vmem>>) attributes {dimension_semantics = [#tpu.dimension_semantics<parallel>], iteration_bounds = array<i64: 1>, scalar_prefetch = 0 : i64, scratch_operands = 0 : i64, tpu.core_type = #tpu.core_type<tc>, window_params = [{transform_indices = @transform_0, window_bounds = array<i64: 8, 32>}, {transform_indices = @transform_1, window_bounds = array<i64: 8, 16>}, {pipeline_mode = #tpu.pipeline_mode<synchronous>, transform_indices = @transform_2, window_bounds = array<i64: 32, 64>}, {pipeline_mode = #tpu.pipeline_mode<synchronous>, transform_indices = @transform_3, window_bounds = array<i64: 1, 64>}, {pipeline_mode = #tpu.pipeline_mode<synchronous>, transform_indices = @transform_4, window_bounds = array<i64: 64, 32>}, {pipeline_mode = #tpu.pipeline_mode<synchronous>, transform_indices = @transform_5, window_bounds = array<i64: 1, 32>}, {pipeline_mode = #tpu.pipeline_mode<synchronous>, transform_indices = @transform_6, window_bounds = array<i64: 32, 2>}, {pipeline_mode = #tpu.pipeline_mode<synchronous>, transform_indices = @transform_7, window_bounds = array<i64: 16, 2>}, {pipeline_mode = #tpu.pipeline_mode<synchronous>, transform_indices = @transform_8, window_bounds = array<i64: 1, 2>}, {transform_indices = @transform_9, window_bounds = array<i64: 8, 2>}]} {
    %c0 = arith.constant 0 : index
    %c0_0 = arith.constant 0 : index
    %0 = vector.load %arg1[%c0, %c0_0] : memref<8x32xf32, #tpu.memory_space<vmem>>, vector<8x32xf32>
    %c0_1 = arith.constant 0 : index
    %c0_2 = arith.constant 0 : index
    %1 = vector.load %arg3[%c0_1, %c0_2] : memref<32x64xf32, #tpu.memory_space<vmem>>, vector<32x64xf32>
    %cst = arith.constant dense<0.000000e+00> : vector<8x64xf32>
    %2 = tpu.matmul %0, %1, %cst {dimension_numbers = #tpu.dot_dimension_numbers<[1], [0], [0], [1], [0, 0, 1, 1], [], []>} : vector<8x32xf32>, vector<32x64xf32>, vector<8x64xf32> -> vector<8x64xf32>
    %c0_3 = arith.constant 0 : index
    %c0_4 = arith.constant 0 : index
    %3 = vector.load %arg4[%c0_3, %c0_4] : memref<1x64xf32, #tpu.memory_space<vmem>>, vector<1x64xf32>
    %4 = vector.broadcast %3 : vector<1x64xf32> to vector<8x64xf32>
    %5 = arith.addf %2, %4 : vector<8x64xf32>
    %cst_5 = arith.constant 0.000000e+00 : f32
    %6 = vector.broadcast %cst_5 : f32 to vector<8x64xf32>
    %7 = arith.maximumf %5, %6 : vector<8x64xf32>
    %c0_6 = arith.constant 0 : index
    %c0_7 = arith.constant 0 : index
    %8 = vector.load %arg5[%c0_6, %c0_7] : memref<64x32xf32, #tpu.memory_space<vmem>>, vector<64x32xf32>
    %cst_8 = arith.constant dense<0.000000e+00> : vector<8x32xf32>
    %9 = tpu.matmul %7, %8, %cst_8 {dimension_numbers = #tpu.dot_dimension_numbers<[1], [0], [0], [1], [0, 0, 1, 1], [], []>} : vector<8x64xf32>, vector<64x32xf32>, vector<8x32xf32> -> vector<8x32xf32>
    %c0_9 = arith.constant 0 : index
    %c0_10 = arith.constant 0 : index
    %10 = vector.load %arg6[%c0_9, %c0_10] : memref<1x32xf32, #tpu.memory_space<vmem>>, vector<1x32xf32>
    %11 = vector.broadcast %10 : vector<1x32xf32> to vector<8x32xf32>
    %12 = arith.addf %9, %11 : vector<8x32xf32>
    %cst_11 = arith.constant 0.000000e+00 : f32
    %13 = vector.broadcast %cst_11 : f32 to vector<8x32xf32>
    %14 = arith.maximumf %12, %13 : vector<8x32xf32>
    %c0_12 = arith.constant 0 : index
    %c0_13 = arith.constant 0 : index
    %15 = vector.load %arg7[%c0_12, %c0_13] : memref<32x2xf32, #tpu.memory_space<vmem>>, vector<32x2xf32>
    %cst_14 = arith.constant dense<0.000000e+00> : vector<8x2xf32>
    %16 = tpu.matmul %14, %15, %cst_14 {dimension_numbers = #tpu.dot_dimension_numbers<[1], [0], [0], [1], [0, 0, 1, 1], [], []>} : vector<8x32xf32>, vector<32x2xf32>, vector<8x2xf32> -> vector<8x2xf32>
    %c0_15 = arith.constant 0 : index
    %c0_16 = arith.constant 0 : index
    %17 = vector.load %arg2[%c0_15, %c0_16] : memref<8x16xf32, #tpu.memory_space<vmem>>, vector<8x16xf32>
    %c0_17 = arith.constant 0 : index
    %c0_18 = arith.constant 0 : index
    %18 = vector.load %arg8[%c0_17, %c0_18] : memref<16x2xf32, #tpu.memory_space<vmem>>, vector<16x2xf32>
    %cst_19 = arith.constant dense<0.000000e+00> : vector<8x2xf32>
    %19 = tpu.matmul %17, %18, %cst_19 {dimension_numbers = #tpu.dot_dimension_numbers<[1], [0], [0], [1], [0, 0, 1, 1], [], []>} : vector<8x16xf32>, vector<16x2xf32>, vector<8x2xf32> -> vector<8x2xf32>
    %20 = arith.addf %16, %19 : vector<8x2xf32>
    %c0_20 = arith.constant 0 : index
    %c0_21 = arith.constant 0 : index
    %21 = vector.load %arg9[%c0_20, %c0_21] : memref<1x2xf32, #tpu.memory_space<vmem>>, vector<1x2xf32>
    %22 = vector.broadcast %21 : vector<1x2xf32> to vector<8x2xf32>
    %23 = arith.addf %20, %22 : vector<8x2xf32>
    %24 = arith.negf %23 : vector<8x2xf32>
    %25 = math.exp %24 : vector<8x2xf32>
    %cst_22 = arith.constant 1.000000e+00 : f32
    %26 = vector.broadcast %cst_22 : f32 to vector<8x2xf32>
    %27 = arith.addf %26, %25 : vector<8x2xf32>
    %28 = arith.divf %26, %27 : vector<8x2xf32>
    %c0_23 = arith.constant 0 : index
    %c0_24 = arith.constant 0 : index
    %29 = vector.load %arg10[%c0_23, %c0_24] : memref<8x2xf32, #tpu.memory_space<vmem>>, vector<8x2xf32>
    tpu.vector_store %arg10[%c0_23, %c0_24], %28 {strides = array<i32>} : memref<8x2xf32, #tpu.memory_space<vmem>>, vector<8x2xf32>,
    return
  }
  func.func @transform_0(%arg0: i32) -> (i32, i32) {
    %c0_i32 = arith.constant 0 : i32
    %c0_i32_0 = arith.constant 0 : i32
    return %arg0, %c0_i32 : i32, i32
  }
  func.func @transform_1(%arg0: i32) -> (i32, i32) {
    %c0_i32 = arith.constant 0 : i32
    %c0_i32_0 = arith.constant 0 : i32
    return %arg0, %c0_i32 : i32, i32
  }
  func.func @transform_2(%arg0: i32) -> (i32, i32) {
    %c0_i32 = arith.constant 0 : i32
    %c0_i32_0 = arith.constant 0 : i32
    %c0_i32_1 = arith.constant 0 : i32
    return %c0_i32, %c0_i32_0 : i32, i32
  }
  func.func @transform_3(%arg0: i32) -> (i32, i32) {
    %c0_i32 = arith.constant 0 : i32
    %c0_i32_0 = arith.constant 0 : i32
    %c0_i32_1 = arith.constant 0 : i32
    return %c0_i32, %c0_i32_0 : i32, i32
  }
  func.func @transform_4(%arg0: i32) -> (i32, i32) {
    %c0_i32 = arith.constant 0 : i32
    %c0_i32_0 = arith.constant 0 : i32
    %c0_i32_1 = arith.constant 0 : i32
    return %c0_i32, %c0_i32_0 : i32, i32
  }
  func.func @transform_5(%arg0: i32) -> (i32, i32) {
    %c0_i32 = arith.constant 0 : i32
    %c0_i32_0 = arith.constant 0 : i32
    %c0_i32_1 = arith.constant 0 : i32
    return %c0_i32, %c0_i32_0 : i32, i32
  }
  func.func @transform_6(%arg0: i32) -> (i32, i32) {
    %c0_i32 = arith.constant 0 : i32
    %c0_i32_0 = arith.constant 0 : i32
    %c0_i32_1 = arith.constant 0 : i32
    return %c0_i32, %c0_i32_0 : i32, i32
  }
  func.func @transform_7(%arg0: i32) -> (i32, i32) {
    %c0_i32 = arith.constant 0 : i32
    %c0_i32_0 = arith.constant 0 : i32
    %c0_i32_1 = arith.constant 0 : i32
    return %c0_i32, %c0_i32_0 : i32, i32
  }
  func.func @transform_8(%arg0: i32) -> (i32, i32) {
    %c0_i32 = arith.constant 0 : i32
    %c0_i32_0 = arith.constant 0 : i32
    %c0_i32_1 = arith.constant 0 : i32
    return %c0_i32, %c0_i32_0 : i32, i32
  }
  func.func @transform_9(%arg0: i32) -> (i32, i32) {
    %c0_i32 = arith.constant 0 : i32
    %c0_i32_0 = arith.constant 0 : i32
    return %arg0, %c0_i32 : i32, i32
  }
}

</mosaic_0001>

<llo_original>
// kernel: tpu_custom_call.1
$region0: #{tpu_custom_call.1}
  #allocation0 [shape = 'u32[]', space=smem, size = 0x4, offset = 0x4, fixed_abs, tag = 'smem constant byte address 0x4 - core index']
  #allocation1 [shape = 'u32[144,128]{1,0:T(1,128)}', space=vmem, size = 0x12000, scoped, tag = 'internal scratch']
  %s0 = inlined_call_operand.vmem [shape: f32[8,32], index: 0, kind: input, shape index: {}]
  %s1 = inlined_call_operand.vmem [shape: f32[8,16], index: 1, kind: input, shape index: {}]
  %s2 = inlined_call_operand.vmem [shape: f32[32,64], index: 2, kind: input, shape index: {}]
  %s3 = inlined_call_operand.vmem [shape: f32[1,64], index: 3, kind: input, shape index: {}]
  %s4 = inlined_call_operand.vmem [shape: f32[64,32], index: 4, kind: input, shape index: {}]
  %s5 = inlined_call_operand.vmem [shape: f32[1,32], index: 5, kind: input, shape index: {}]
  %s6 = inlined_call_operand.vmem [shape: f32[32,2], index: 6, kind: input, shape index: {}]
  %s7 = inlined_call_operand.vmem [shape: f32[16,2], index: 7, kind: input, shape index: {}]
  %s8 = inlined_call_operand.vmem [shape: f32[1,2], index: 8, kind: input, shape index: {}]
  %s9 = inlined_call_operand.vmem [shape: f32[8,2], index: 9, kind: output, shape index: {}]
  %s10 = sld [smem:[#allocation0]]
  $region46: #{tpu_custom_call.1} parent=0
    _
  %s12 = ssub.s32 1, %s10
  %s13 = scalar_select 0, %s12, %s10
  // Predicated region
  $region2: #{tpu_custom_call.1} parent=0 // pred_check
    _
  $region3: #{tpu_custom_call.1} parent=0 // pred_check_branch
    %15 = sbr.rel (0) target = $region5
  $region4: #{tpu_custom_call.1} parent=0 // pred_region
    _
  $region5: #{tpu_custom_call.1} parent=0 // pred_fallthru
    _
  // Predicated region
  $region6: #{tpu_custom_call.1} parent=0 // pred_check
    _
  $region7: #{tpu_custom_call.1} parent=0 // pred_check_branch
    %17 = sbr.rel (0) target = $region9
  $region8: #{tpu_custom_call.1} parent=0 // pred_region
    _
  $region9: #{tpu_custom_call.1} parent=0 // pred_fallthru
    _
  // Predicated region
  $region10: #{tpu_custom_call.1} parent=0 // pred_check
    _
  $region11: #{tpu_custom_call.1} parent=0 // pred_check_branch
    %19 = sbr.rel (0) target = $region13
  $region12: #{tpu_custom_call.1} parent=0 // pred_region
    _
  $region13: #{tpu_custom_call.1} parent=0 // pred_fallthru
    _
  // Predicated region
  $region14: #{tpu_custom_call.1} parent=0 // pred_check
    _
  $region15: #{tpu_custom_call.1} parent=0 // pred_check_branch
    %21 = sbr.rel (0) target = $region17
  $region16: #{tpu_custom_call.1} parent=0 // pred_region
    _
  $region17: #{tpu_custom_call.1} parent=0 // pred_fallthru
    _
  // Predicated region
  $region18: #{tpu_custom_call.1} parent=0 // pred_check
    _
  $region19: #{tpu_custom_call.1} parent=0 // pred_check_branch
    %23 = sbr.rel (0) target = $region21
  $region20: #{tpu_custom_call.1} parent=0 // pred_region
    _
  $region21: #{tpu_custom_call.1} parent=0 // pred_fallthru
    _
  // Predicated region
  $region22: #{tpu_custom_call.1} parent=0 // pred_check
    _
  $region23: #{tpu_custom_call.1} parent=0 // pred_check_branch
    %25 = sbr.rel (0) target = $region25
  $region24: #{tpu_custom_call.1} parent=0 // pred_region
    _
  $region25: #{tpu_custom_call.1} parent=0 // pred_fallthru
    _
  // Predicated region
  $region26: #{tpu_custom_call.1} parent=0 // pred_check
    _
  $region27: #{tpu_custom_call.1} parent=0 // pred_check_branch
    %27 = sbr.rel (0) target = $region29
  $region28: #{tpu_custom_call.1} parent=0 // pred_region
    _
  $region29: #{tpu_custom_call.1} parent=0 // pred_fallthru
    _
  // Predicated region
  $region30: #{tpu_custom_call.1} parent=0 // pred_check
    _
  $region31: #{tpu_custom_call.1} parent=0 // pred_check_branch
    %29 = sbr.rel (0) target = $region33
  $region32: #{tpu_custom_call.1} parent=0 // pred_region
    _
  $region33: #{tpu_custom_call.1} parent=0 // pred_fallthru
    _
  // Predicated region
  $region34: #{tpu_custom_call.1} parent=0 // pred_check
    _
  $region35: #{tpu_custom_call.1} parent=0 // pred_check_branch
    %31 = sbr.rel (0) target = $region37
  $region36: #{tpu_custom_call.1} parent=0 // pred_region
    _
  $region37: #{tpu_custom_call.1} parent=0 // pred_fallthru
    _
  %v32 = vld [vmem:[%s0] sm:$0xff]
  %v33 = vld [vmem:[%s2] sm:$0xff]
  %v34 = vld [vmem:[%s2 + $0x8] sm:$0xff]
  %v35 = vld [vmem:[%s2 + $0x10] sm:$0xff]
  %v36 = vld [vmem:[%s2 + $0x18] sm:$0xff]
  %v37 = vld [vmem:[%s3] sm:$0x1]
  %v39 = vlaneseq
  %v40 = vshrl.u32 %v39, 7
  %v41 = vsub.s32 0, %v40
  %v42 = vrot.slane %v37, %v41
  %vm44 = vcmask 261120
  %v46 = vsel %vm44, %v32, 0
  %48 = vmatprep.subr.mxu0 0.0
  %49 = vmatpush1.msra.mxu0 %v33
  %50 = vmatprep.subr.mxu0 0.0
  %51 = vmatpush1.msra.mxu0 %v34
  %52 = vmatprep.subr.mxu0 0.0
  %53 = vmatpush1.msra.mxu0 %v35
  %54 = vmatprep.subr.mxu0 0.0
  %55 = vmatpush1.msra.mxu0 %v36
  %56 = vmatprep.subr.mxu0 0.0
  %57 = vmatpush1.msra.mxu0 0.0
  %58 = vmatprep.subr.mxu0 0.0
  %59 = vmatpush1.msra.mxu0 0.0
  %60 = vmatprep.subr.mxu0 0.0
  %61 = vmatpush1.msra.mxu0 0.0
  %62 = vmatprep.subr.mxu0 0.0
  %63 = vmatpush1.msra.mxu0 0.0
  %64 = vmatprep.subr.mxu0 0.0
  %65 = vmatpush1.msra.mxu0 0.0
  %66 = vmatprep.subr.mxu0 0.0
  %67 = vmatpush1.msra.mxu0 0.0
  %68 = vmatprep.subr.mxu0 0.0
  %69 = vmatpush1.msra.mxu0 0.0
  %70 = vmatprep.subr.mxu0 0.0
  %71 = vmatpush1.msra.mxu0 0.0
  %72 = vmatprep.subr.mxu0 0.0
  %73 = vmatpush1.msra.mxu0 0.0
  %74 = vmatprep.subr.mxu0 0.0
  %75 = vmatpush1.msra.mxu0 0.0
  %76 = vmatprep.subr.mxu0 0.0
  %77 = vmatpush1.msra.mxu0 0.0
  %78 = vmatprep.subr.mxu0 0.0
  %79 = vmatpush1.msra.mxu0 0.0
  %80 = vmatprep.subr.mxu0 0.0
  %81 = vmatpush1.msra.mxu0 0.0
  %82 = vmatprep.subr.mxu0 0.0
  %83 = vmatpush1.msra.mxu0 0.0
  %84 = vmatprep.subr.mxu0 0.0
  %85 = vmatpush1.msra.mxu0 0.0
  %86 = vmatprep.subr.mxu0 0.0
  %87 = vmatpush1.msra.mxu0 0.0
  %88 = vmatprep.subr.mxu0 0.0
  %89 = vmatpush1.msra.mxu0 0.0
  %90 = vmatprep.subr.mxu0 0.0
  %91 = vmatpush1.msra.mxu0 0.0
  %92 = vmatprep.subr.mxu0 0.0
  %93 = vmatpush1.msra.mxu0 0.0
  %94 = vmatprep.subr.mxu0 0.0
  %95 = vmatpush1.msra.mxu0 0.0
  %96 = vmatprep.subr.mxu0 0.0
  %97 = vmatpush1.msra.mxu0 0.0
  %98 = vmatprep.subr.mxu0 0.0
  %99 = vmatpush1.msra.mxu0 0.0
  %100 = vmatprep.subr.mxu0 0.0
  %101 = vmatpush1.msra.mxu0 0.0
  %102 = vmatprep.subr.mxu0 0.0
  %103 = vmatpush1.msra.mxu0 0.0
  %104 = vmatprep.subr.mxu0 0.0
  %105 = vmatpush1.msra.mxu0 0.0
  %106 = vmatprep.subr.mxu0 0.0
  %107 = vmatpush1.msra.mxu0 0.0
  %108 = vmatprep.subr.mxu0 0.0
  %109 = vmatpush1.msra.mxu0 0.0
  %110 = vmatprep.subr.mxu0 0.0
  %111 = vmatpush1.msra.mxu0 0.0
  %112 = vmatprep.mubr.f32.mxu0 0.0
  %113 = vmatmul.mubr.f32.gmra.mrb[0].mxu0 %v46
  %v114 = vpop.f32.mrb[0].mxu0
  %v115 = vadd.f32 %v42, %v114
  %v116 = vpop.f32.mrb[0].mxu0
  %117 = vdwg.mxu0
  %v118 = vmax.f32 %v115, 0.0
  %v119 = vld [vmem:[%s4] sm:$0xff]
  %v120 = vld [vmem:[%s4 + $0x8] sm:$0xff]
  %v121 = vld [vmem:[%s4 + $0x10] sm:$0xff]
  %v122 = vld [vmem:[%s4 + $0x18] sm:$0xff]
  %v123 = vld [vmem:[%s4 + $0x20] sm:$0xff]
  %v124 = vld [vmem:[%s4 + $0x28] sm:$0xff]
  %v125 = vld [vmem:[%s4 + $0x30] sm:$0xff]
  %v126 = vld [vmem:[%s4 + $0x38] sm:$0xff]
  %v127 = vld [vmem:[%s5] sm:$0x1]
  %v129 = vlaneseq
  %v130 = vshrl.u32 %v129, 7
  %v131 = vsub.s32 0, %v130
  %v132 = vrot.slane %v127, %v131
  %vm134 = vcmask 523264
  %v136 = vsel %vm134, %v118, 0
  %138 = vmatprep.subr.mxu0 0.0
  %139 = vmatpush1.msra.mxu0 %v119
  %140 = vmatprep.subr.mxu0 0.0
  %141 = vmatpush1.msra.mxu0 %v120
  %142 = vmatprep.subr.mxu0 0.0
  %143 = vmatpush1.msra.mxu0 %v121
  %144 = vmatprep.subr.mxu0 0.0
  %145 = vmatpush1.msra.mxu0 %v122
  %146 = vmatprep.subr.mxu0 0.0
  %147 = vmatpush1.msra.mxu0 %v123
  %148 = vmatprep.subr.mxu0 0.0
  %149 = vmatpush1.msra.mxu0 %v124
  %150 = vmatprep.subr.mxu0 0.0
  %151 = vmatpush1.msra.mxu0 %v125
  %152 = vmatprep.subr.mxu0 0.0
  %153 = vmatpush1.msra.mxu0 %v126
  %154 = vmatprep.subr.mxu0 0.0
  %155 = vmatpush1.msra.mxu0 0.0
  %156 = vmatprep.subr.mxu0 0.0
  %157 = vmatpush1.msra.mxu0 0.0
  %158 = vmatprep.subr.mxu0 0.0
  %159 = vmatpush1.msra.mxu0 0.0
  %160 = vmatprep.subr.mxu0 0.0
  %161 = vmatpush1.msra.mxu0 0.0
  %162 = vmatprep.subr.mxu0 0.0
  %163 = vmatpush1.msra.mxu0 0.0
  %164 = vmatprep.subr.mxu0 0.0
  %165 = vmatpush1.msra.mxu0 0.0
  %166 = vmatprep.subr.mxu0 0.0
  %167 = vmatpush1.msra.mxu0 0.0
  %168 = vmatprep.subr.mxu0 0.0
  %169 = vmatpush1.msra.mxu0 0.0
  %170 = vmatprep.subr.mxu0 0.0
  %171 = vmatpush1.msra.mxu0 0.0
  %172 = vmatprep.subr.mxu0 0.0
  %173 = vmatpush1.msra.mxu0 0.0
  %174 = vmatprep.subr.mxu0 0.0
  %175 = vmatpush1.msra.mxu0 0.0
  %176 = vmatprep.subr.mxu0 0.0
  %177 = vmatpush1.msra.mxu0 0.0
  %178 = vmatprep.subr.mxu0 0.0
  %179 = vmatpush1.msra.mxu0 0.0
  %180 = vmatprep.subr.mxu0 0.0
  %181 = vmatpush1.msra.mxu0 0.0
  %182 = vmatprep.subr.mxu0 0.0
  %183 = vmatpush1.msra.mxu0 0.0
  %184 = vmatprep.subr.mxu0 0.0
  %185 = vmatpush1.msra.mxu0 0.0
  %186 = vmatprep.subr.mxu0 0.0
  %187 = vmatpush1.msra.mxu0 0.0
  %188 = vmatprep.subr.mxu0 0.0
  %189 = vmatpush1.msra.mxu0 0.0
  %190 = vmatprep.subr.mxu0 0.0
  %191 = vmatpush1.msra.mxu0 0.0
  %192 = vmatprep.subr.mxu0 0.0
  %193 = vmatpush1.msra.mxu0 0.0
  %194 = vmatprep.subr.mxu0 0.0
  %195 = vmatpush1.msra.mxu0 0.0
  %196 = vmatprep.subr.mxu0 0.0
  %197 = vmatpush1.msra.mxu0 0.0
  %198 = vmatprep.subr.mxu0 0.0
  %199 = vmatpush1.msra.mxu0 0.0
  %200 = vmatprep.subr.mxu0 0.0
  %201 = vmatpush1.msra.mxu0 0.0
  %202 = vmatprep.mubr.f32.mxu0 0.0
  %203 = vmatmul.mubr.f32.gmra.mrb[0].mxu0 %v136
  %v204 = vpop.f32.mrb[0].mxu0
  %v205 = vadd.f32 %v132, %v204
  %v206 = vpop.f32.mrb[0].mxu0
  %207 = vdwg.mxu0
  %v208 = vmax.f32 %v205, 0.0
  %v209 = vld [vmem:[%s6] sm:$0xff]
  %v210 = vld [vmem:[%s6 + $0x8] sm:$0xff]
  %v211 = vld [vmem:[%s6 + $0x10] sm:$0xff]
  %v212 = vld [vmem:[%s6 + $0x18] sm:$0xff]
  %v213 = vld [vmem:[%s1] sm:$0xff]
  %v214 = vld [vmem:[%s7] sm:$0xff]
  %v215 = vld [vmem:[%s7 + $0x8] sm:$0xff]
  %vm216 = vcmask 130048
  %v218 = vsel %vm216, %v213, 0
  %220 = vmatprep.subr.mxu0 0.0
  %221 = vmatpush1.msra.mxu0 %v214
  %222 = vmatprep.subr.mxu0 0.0
  %223 = vmatpush1.msra.mxu0 %v215
  %224 = vmatprep.subr.mxu0 0.0
  %225 = vmatpush1.msra.mxu0 0.0
  %226 = vmatprep.subr.mxu0 0.0
  %227 = vmatpush1.msra.mxu0 0.0
  %228 = vmatprep.subr.mxu0 0.0
  %229 = vmatpush1.msra.mxu0 0.0
  %230 = vmatprep.subr.mxu0 0.0
  %231 = vmatpush1.msra.mxu0 0.0
  %232 = vmatprep.subr.mxu0 0.0
  %233 = vmatpush1.msra.mxu0 0.0
  %234 = vmatprep.subr.mxu0 0.0
  %235 = vmatpush1.msra.mxu0 0.0
  %236 = vmatprep.subr.mxu0 0.0
  %237 = vmatpush1.msra.mxu0 0.0
  %238 = vmatprep.subr.mxu0 0.0
  %239 = vmatpush1.msra.mxu0 0.0
  %240 = vmatprep.subr.mxu0 0.0
  %241 = vmatpush1.msra.mxu0 0.0
  %242 = vmatprep.subr.mxu0 0.0
  %243 = vmatpush1.msra.mxu0 0.0
  %244 = vmatprep.subr.mxu0 0.0
  %245 = vmatpush1.msra.mxu0 0.0
  %246 = vmatprep.subr.mxu0 0.0
  %247 = vmatpush1.msra.mxu0 0.0
  %248 = vmatprep.subr.mxu0 0.0
  %249 = vmatpush1.msra.mxu0 0.0
  %250 = vmatprep.subr.mxu0 0.0
  %251 = vmatpush1.msra.mxu0 0.0
  %252 = vmatprep.subr.mxu0 0.0
  %253 = vmatpush1.msra.mxu0 0.0
  %254 = vmatprep.subr.mxu0 0.0
  %255 = vmatpush1.msra.mxu0 0.0
  %256 = vmatprep.subr.mxu0 0.0
  %257 = vmatpush1.msra.mxu0 0.0
  %258 = vmatprep.subr.mxu0 0.0
  %259 = vmatpush1.msra.mxu0 0.0
  %260 = vmatprep.subr.mxu0 0.0
  %261 = vmatpush1.msra.mxu0 0.0
  %262 = vmatprep.subr.mxu0 0.0
  %263 = vmatpush1.msra.mxu0 0.0
  %264 = vmatprep.subr.mxu0 0.0
  %265 = vmatpush1.msra.mxu0 0.0
  %266 = vmatprep.subr.mxu0 0.0
  %267 = vmatpush1.msra.mxu0 0.0
  %268 = vmatprep.subr.mxu0 0.0
  %269 = vmatpush1.msra.mxu0 0.0
  %270 = vmatprep.subr.mxu0 0.0
  %271 = vmatpush1.msra.mxu0 0.0
  %272 = vmatprep.subr.mxu0 0.0
  %273 = vmatpush1.msra.mxu0 0.0
  %274 = vmatprep.subr.mxu0 0.0
  %275 = vmatpush1.msra.mxu0 0.0
  %276 = vmatprep.subr.mxu0 0.0
  %277 = vmatpush1.msra.mxu0 0.0
  %278 = vmatprep.subr.mxu0 0.0
  %279 = vmatpush1.msra.mxu0 0.0
  %280 = vmatprep.subr.mxu0 0.0
  %281 = vmatpush1.msra.mxu0 0.0
  %282 = vmatprep.subr.mxu0 0.0
  %283 = vmatpush1.msra.mxu0 0.0
  %284 = vmatprep.mubr.f32.mxu0 0.0
  %285 = vmatmul.mubr.f32.gmra.mrb[0].mxu0 %v218
  %v286 = vpop.f32.mrb[0].mxu0
  %v287 = vadd.f32 0.0, %v286
  %v288 = vpop.f32.mrb[0].mxu0
  %289 = vdwg.mxu0
  %v291 = vsel %vm44, %v208, 0
  %293 = vmatprep.subr.mxu0 0.0
  %294 = vmatpush1.msra.mxu0 %v209
  %295 = vmatprep.subr.mxu0 0.0
  %296 = vmatpush1.msra.mxu0 %v210
  %297 = vmatprep.subr.mxu0 0.0
  %298 = vmatpush1.msra.mxu0 %v211
  %299 = vmatprep.subr.mxu0 0.0
  %300 = vmatpush1.msra.mxu0 %v212
  %301 = vmatprep.subr.mxu0 0.0
  %302 = vmatpush1.msra.mxu0 0.0
  %303 = vmatprep.subr.mxu0 0.0
  %304 = vmatpush1.msra.mxu0 0.0
  %305 = vmatprep.subr.mxu0 0.0
  %306 = vmatpush1.msra.mxu0 0.0
  %307 = vmatprep.subr.mxu0 0.0
  %308 = vmatpush1.msra.mxu0 0.0
  %309 = vmatprep.subr.mxu0 0.0
  %310 = vmatpush1.msra.mxu0 0.0
  %311 = vmatprep.subr.mxu0 0.0
  %312 = vmatpush1.msra.mxu0 0.0
  %313 = vmatprep.subr.mxu0 0.0
  %314 = vmatpush1.msra.mxu0 0.0
  %315 = vmatprep.subr.mxu0 0.0
  %316 = vmatpush1.msra.mxu0 0.0
  %317 = vmatprep.subr.mxu0 0.0
  %318 = vmatpush1.msra.mxu0 0.0
  %319 = vmatprep.subr.mxu0 0.0
  %320 = vmatpush1.msra.mxu0 0.0
  %321 = vmatprep.subr.mxu0 0.0
  %322 = vmatpush1.msra.mxu0 0.0
  %323 = vmatprep.subr.mxu0 0.0
  %324 = vmatpush1.msra.mxu0 0.0
  %325 = vmatprep.subr.mxu0 0.0
  %326 = vmatpush1.msra.mxu0 0.0
  %327 = vmatprep.subr.mxu0 0.0
  %328 = vmatpush1.msra.mxu0 0.0
  %329 = vmatprep.subr.mxu0 0.0
  %330 = vmatpush1.msra.mxu0 0.0
  %331 = vmatprep.subr.mxu0 0.0
  %332 = vmatpush1.msra.mxu0 0.0
  %333 = vmatprep.subr.mxu0 0.0
  %334 = vmatpush1.msra.mxu0 0.0
  %335 = vmatprep.subr.mxu0 0.0
  %336 = vmatpush1.msra.mxu0 0.0
  %337 = vmatprep.subr.mxu0 0.0
  %338 = vmatpush1.msra.mxu0 0.0
  %339 = vmatprep.subr.mxu0 0.0
  %340 = vmatpush1.msra.mxu0 0.0
  %341 = vmatprep.subr.mxu0 0.0
  %342 = vmatpush1.msra.mxu0 0.0
  %343 = vmatprep.subr.mxu0 0.0
  %344 = vmatpush1.msra.mxu0 0.0
  %345 = vmatprep.subr.mxu0 0.0
  %346 = vmatpush1.msra.mxu0 0.0
  %347 = vmatprep.subr.mxu0 0.0
  %348 = vmatpush1.msra.mxu0 0.0
  %349 = vmatprep.subr.mxu0 0.0
  %350 = vmatpush1.msra.mxu0 0.0
  %351 = vmatprep.subr.mxu0 0.0
  %352 = vmatpush1.msra.mxu0 0.0
  %353 = vmatprep.subr.mxu0 0.0
  %354 = vmatpush1.msra.mxu0 0.0
  %355 = vmatprep.subr.mxu0 0.0
  %356 = vmatpush1.msra.mxu0 0.0
  %357 = vmatprep.mubr.f32.mxu0 0.0
  %358 = vmatmul.mubr.f32.gmra.mrb[0].mxu0 %v291
  %v359 = vpop.f32.mrb[0].mxu0
  %v360 = vadd.f32 %v287, %v359
  %v361 = vpop.f32.mrb[0].mxu0
  %362 = vdwg.mxu0
  %v363 = vld [vmem:[%s8] sm:$0x1]
  %v365 = vlaneseq
  %v366 = vshrl.u32 %v365, 7
  %v367 = vsub.s32 0, %v366
  %v368 = vrot.slane %v363, %v367
  %v370 = vadd.f32 %v360, %v368
  %v371 = vxor.u32 %v370, 2147483648
  %v372 = vmul.f32 %v371, 1.442695
  %v373 = vpow.pop %v372
  %v374 = vadd.f32 %v373, 1.0
  %v375 = vrcp.pop %v374
  %v376 = vmul.f32 1.0, %v375
  %vm377 = vcmask 15360
  %378 = vst.msk [vmem:[%s9] sm:$0xff] %vm377, %v376
  // Predicated region
  $region38: #{tpu_custom_call.1} parent=0 // pred_check
    _
  $region39: #{tpu_custom_call.1} parent=0 // pred_check_branch
    %380 = sbr.rel (0) target = $region41
  $region40: #{tpu_custom_call.1} parent=0 // pred_region
    _
  $region41: #{tpu_custom_call.1} parent=0 // pred_fallthru
    _
  // Predicated region
  $region42: #{tpu_custom_call.1} parent=0 // pred_check
    _
  $region43: #{tpu_custom_call.1} parent=0 // pred_check_branch
    %382 = sbr.rel (0) target = $region45
  $region44: #{tpu_custom_call.1} parent=0 // pred_region
    _
  $region45: #{tpu_custom_call.1} parent=0 // pred_fallthru
    _

</llo_original>
